<compile_context>
chip_gen: v7x
topology: tpu7x:2x2x1
jax: 0.10.0
libtpu: 0.0.40
codegen_flags: <defaults>
</compile_context>

<pallas_src>
import functools

import jax
import jax.numpy as jnp
import numpy as np
from jax.experimental import pallas as pl
from jax.experimental.pallas import tpu as pltpu

OUT_LANES = 128  # lane-dense output width (>= horizon); also equals 4*hidden for hidden=32


# ----------------------------- Pallas kernel ---------------------------------
def gconvgru_kernel(lap_ref, xaug_ref, w_ref, out_ref, *, f_pad, hidden):
    # Packed weight slab rows:
    #   [0 : f_pad]                fused gate weights [Wc0 | Wc1] + bias row (+ zero pad rows)
    #   [f_pad : f_pad+hidden]     linear head, zero-padded to 128 lanes
    #   [f_pad+hidden]             linear bias, zero-padded to 128 lanes
    wpack = w_ref[0:f_pad, :]                                   # [f_pad, 4H]
    wlin = w_ref[f_pad:f_pad + hidden, :]                       # [H, 128]
    blin = w_ref[f_pad + hidden:f_pad + hidden + 1, :]          # [1, 128]

    lap = lap_ref[...]                                          # [N, N]
    x_aug = xaug_ref[...]                                       # [N, f_pad] = [X | 1 | 0-pad]

    # Single fused, lane-dense gate dot: [N, f_pad] @ [f_pad, 4H] -> [N, 128].
    p = jnp.dot(x_aug, wpack, preferred_element_type=jnp.float32)
    h2 = 2 * hidden
    p0 = p[:, :h2]                                              # X@Wc0 + folded biases (T0 term)
    p1 = p[:, h2:]                                              # X@Wc1 (operand of T1 term)

    # Re-associated order-1 Chebyshev term: L_hat @ (X @ Wc1); both operands >= 64 lanes.
    pre = p0 + jnp.dot(lap, p1.astype(lap.dtype),
                       preferred_element_type=jnp.float32)      # [N, 2H]

    z = jax.nn.sigmoid(pre[:, :hidden])                         # update gate
    h_tilde = jnp.tanh(pre[:, hidden:])                         # candidate state
    # H0 == 0  =>  H' = Z*H0 + (1-Z)*Ht = (1-Z)*Ht   (reset gate R is a no-op here)
    h_relu = jnp.maximum((1.0 - z) * h_tilde, 0.0)              # [N, H]

    # Lane-dense output store ([N, 128]); caller slices [:, :horizon] outside the kernel.
    out = jnp.dot(h_relu.astype(wlin.dtype), wlin,
                  preferred_element_type=jnp.float32) + blin
    out_ref[...] = out.astype(out_ref.dtype)


# ----------------------- One-time (static graph) glue --------------------------
def build_scaled_laplacian(edge_index, edge_weight, num_nodes):
    """Dense scaled Laplacian L_hat = -D^{-1/2} A D^{-1/2} (lambda_max=2, 'sym', zero diag).

    Built with segment_sum + one-hot matmuls (no scatter-add). For a static graph call this
    ONCE and reuse across forward calls (hoisted out of the per-call path).
    NOTE: degree is taken over the source index, which matches PyG ChebConv only for
    symmetric edge lists with symmetric weights.
    """
    row, col = edge_index[0], edge_index[1]                     # source, target (PyG)
    ew = edge_weight.astype(jnp.float32)
    deg = jax.ops.segment_sum(ew, row, num_segments=num_nodes)
    dinv = jnp.where(deg > 0, jax.lax.rsqrt(jnp.maximum(deg, 1e-30)), 0.0)
    w_norm = -dinv[row] * ew * dinv[col]
    onehot_t = jax.nn.one_hot(col, num_nodes, dtype=jnp.float32)   # [E, N] target rows
    onehot_s = jax.nn.one_hot(row, num_nodes, dtype=jnp.float32)   # [E, N] source cols
    # lap[target, source] = sum_e 1[col_e==t] * w_norm_e * 1[row_e==s]
    return onehot_t.T @ (w_norm[:, None] * onehot_s)               # [N, N]


def pack_params(params, node_features, f_pad=8):
    """One-time weight packing into a single [f_pad + H + 1, 128] slab.

    Gate order in the fused slab: [Z | Ht] for both Chebyshev orders; the R gate and all
    H-side matmuls are dropped because the hidden state starts at zero in this module's
    forward (H-side cheb reduces to its bias, folded below).
    """
    hidden = params["wxz"].shape[2]
    horizon = params["wlin"].shape[1]
    assert 4 * hidden == OUT_LANES, "packing below assumes 4*hidden == 128"
    assert node_features + 1 <= f_pad

    wc0 = jnp.concatenate([params["wxz"][0], params["wxh"][0]], axis=-1)   # [F, 2H]
    wc1 = jnp.concatenate([params["wxz"][1], params["wxh"][1]], axis=-1)   # [F, 2H]
    wgate = jnp.concatenate([wc0, wc1], axis=-1)                           # [F, 4H]
    # H-side cheb(H0, W, b) == b -> fold H-side biases into X-side biases.  Bias row
    # multiplies the ones column of x_aug; zero on the Wc1 half so L_hat never hits it.
    b_gate = jnp.concatenate([params["bxz"] + params["bhz"],
                              params["bxh"] + params["bhh"],
                              jnp.zeros((1, 2 * hidden), jnp.float32)], axis=-1)  # [1, 4H]
    zero_rows = jnp.zeros((f_pad - node_features - 1, 4 * hidden), jnp.float32)
    wpack = jnp.concatenate([wgate, b_gate, zero_rows], axis=0)            # [f_pad, 4H]

    # Linear head zero-padded to 128 lanes (lane-dense output); bias as the last row.
    wlin_pad = jnp.zeros((hidden, OUT_LANES), jnp.float32).at[:, :horizon].set(params["wlin"])
    blin_pad = jnp.zeros((1, OUT_LANES), jnp.float32).at[:, :horizon].set(params["blin"])
    return jnp.concatenate([wpack, wlin_pad, blin_pad], axis=0)            # [f_pad+H+1, 128]


# ------------------------------- Wrapper --------------------------------------
def gconvgru_temporal_forward(x, lap, w_all, horizon, *, f_pad=8, mxu_dtype=jnp.float32):
    """x: [N, 1, F] (matches PyTorch forward's x.squeeze(1)).  lap: precomputed [N, N]
    scaled Laplacian (static graph — build once).  w_all: slab from pack_params.
    Returns [N, horizon].

    ASSUMES the GConvGRU hidden state starts at zero on every call (H=None per snapshot),
    exactly as GConvGRU_Temporal.forward does; do NOT carry hidden state across calls.
    """
    x2 = jnp.squeeze(x, axis=1).astype(jnp.float32)              # [N, F]
    n, f = x2.shape
    hidden = w_all.shape[0] - f_pad - 1

    # Augment X with a ones column (folds the gate biases) and zero-pad to f_pad columns
    # so the wpack slice in the kernel stays sublane-aligned.
    x_aug = (jnp.zeros((n, f_pad), jnp.float32)
             .at[:, :f].set(x2)
             .at[:, f].set(1.0))

    # Optional bf16 MXU operands (f32 accumulation via preferred_element_type); halves
    # VMEM/DMA bytes and runs at native MXU rate when N is scaled up.
    args = (lap.astype(mxu_dtype), x_aug.astype(mxu_dtype), w_all.astype(mxu_dtype))

    vmem = pltpu.MemorySpace.VMEM
    out128 = pl.pallas_call(
        functools.partial(gconvgru_kernel, f_pad=f_pad, hidden=hidden),
        out_shape=jax.ShapeDtypeStruct((n, OUT_LANES), jnp.float32),
        in_specs=[pl.BlockSpec(memory_space=vmem) for _ in args],
        out_specs=pl.BlockSpec(memory_space=vmem),
    )(*args)
    # TODO(synk): at large N, introduce grid=(N//tm,) over node-row blocks with
    #             dimension_semantics=("parallel",) and vmem_limit_bytes tuned per chip
    #             (v7x has 64 MiB VMEM vs 128 MiB on v5e/v6e).
    return out128[:, :horizon]


# --------------------------- Pure-JAX reference --------------------------------
# Full, un-simplified GConvGRU math (all gates, H-path matmuls, scatter-built Laplacian)
# to verify the optimized kernel end to end.
def reference_forward(x, edge_index, edge_weight, params):
    x2 = jnp.squeeze(x, axis=1)
    n = x2.shape[0]
    hidden = params["whz"].shape[1]
    row, col = edge_index[0], edge_index[1]
    deg = jnp.zeros((n,), jnp.float32).at[row].add(edge_weight)
    dinv = jnp.where(deg > 0, 1.0 / jnp.sqrt(jnp.maximum(deg, 1e-30)), 0.0)
    w_norm = -dinv[row] * edge_weight * dinv[col]
    lap = jnp.zeros((n, n), jnp.float32).at[col, row].add(w_norm)
    h = jnp.zeros((n, hidden), jnp.float32)

    def cheb(inp, w, b):
        return inp @ w[0] + (lap @ inp) @ w[1] + b

    z = jax.nn.sigmoid(cheb(x2, params["wxz"], params["bxz"]) + cheb(h, params["whz"], params["bhz"]))
    r = jax.nn.sigmoid(cheb(x2, params["wxr"], params["bxr"]) + cheb(h, params["whr"], params["bhr"]))
    ht = jnp.tanh(cheb(x2, params["wxh"], params["bxh"]) + cheb(h * r, params["whh"], params["bhh"]))
    h_new = z * h + (1.0 - z) * ht
    return jnp.maximum(h_new, 0.0) @ params["wlin"] + params["blin"]


# --------------------------------- Main -----------------------------------------
if __name__ == "__main__":
    node_features = 4
    hidden = 32
    horizon = 8
    num_nodes = 16

    key = jax.random.PRNGKey(0)
    keys = jax.random.split(key, 16)

    def w(k, shape, scale=0.1):
        return (scale * jax.random.normal(k, shape)).astype(jnp.float32)

    # ChebConv(in, out, K=2) weights: (K, in, out); biases stored as (1, out).
    params = {
        "wxz": w(keys[0], (2, node_features, hidden)), "bxz": w(keys[1], (1, hidden)),
        "whz": w(keys[2], (2, hidden, hidden)),        "bhz": w(keys[3], (1, hidden)),
        "wxr": w(keys[4], (2, node_features, hidden)), "bxr": w(keys[5], (1, hidden)),
        "whr": w(keys[6], (2, hidden, hidden)),        "bhr": w(keys[7], (1, hidden)),
        "wxh": w(keys[8], (2, node_features, hidden)), "bxh": w(keys[9], (1, hidden)),
        "whh": w(keys[10], (2, hidden, hidden)),       "bhh": w(keys[11], (1, hidden)),
        # torch.nn.Linear(32, horizon): weight (horizon, 32) -> transposed to (32, horizon)
        "wlin": w(keys[12], (hidden, horizon)),        "blin": w(keys[13], (1, horizon)),
    }

    # Input x: [num_nodes, 1, node_features] (forward does x.squeeze(1))
    x = jax.random.normal(keys[14], (num_nodes, 1, node_features)).astype(jnp.float32)

    # Symmetric ring graph (both directions), positive symmetric weights.
    src = np.arange(num_nodes)
    dst = (src + 1) % num_nodes
    ei = np.concatenate([np.stack([src, dst]), np.stack([dst, src])], axis=1)
    edge_index = jnp.asarray(ei, dtype=jnp.int32)                        # [2, 2N]
    base_w = 0.5 + jax.random.uniform(keys[15], (num_nodes,))
    edge_weight = jnp.concatenate([base_w, base_w]).astype(jnp.float32)  # symmetric

    # One-time (static graph / static weights) prep — hoisted out of the per-call path.
    lap = build_scaled_laplacian(edge_index, edge_weight, num_nodes)     # [N, N]
    w_all = pack_params(params, node_features)                           # [f_pad+H+1, 128]

    # f32 MXU operands: bit-faithful to the PyTorch module's math.
    out = gconvgru_temporal_forward(x, lap, w_all, horizon)
    out = jax.block_until_ready(out)

    ref = reference_forward(x, edge_index, edge_weight, params)
    assert out.shape == (num_nodes, horizon)
    np.testing.assert_allclose(np.asarray(out), np.asarray(ref), atol=1e-5, rtol=1e-4)

    # bf16 MXU operands (f32 accumulation) — the scaled-N configuration; looser tolerance.
    out_bf16 = gconvgru_temporal_forward(x, lap, w_all, horizon, mxu_dtype=jnp.bfloat16)
    out_bf16 = jax.block_until_ready(out_bf16)
    np.testing.assert_allclose(np.asarray(out_bf16), np.asarray(ref), atol=5e-2, rtol=5e-2)

    print("KERNEL_OK")
</pallas_src>

<mosaic_0001>
module attributes {stable_mosaic.version = 11 : i64} {
  func.func @gconvgru_kernel(%arg0: memref<16x16xf32, #tpu.memory_space<vmem>>, %arg1: memref<16x8xf32, #tpu.memory_space<vmem>>, %arg2: memref<41x128xf32, #tpu.memory_space<vmem>>, %arg3: memref<16x128xf32, #tpu.memory_space<vmem>>) attributes {dimension_semantics = [], scalar_prefetch = 0 : i64, scratch_operands = 0 : i64, tpu.core_type = #tpu.core_type<tc>} {
    %c0 = arith.constant 0 : index
    %c0_0 = arith.constant 0 : index
    %0 = vector.load %arg2[%c0, %c0_0] : memref<41x128xf32, #tpu.memory_space<vmem>>, vector<8x128xf32>
    %c8 = arith.constant 8 : index
    %c0_1 = arith.constant 0 : index
    %1 = vector.load %arg2[%c8, %c0_1] : memref<41x128xf32, #tpu.memory_space<vmem>>, vector<32x128xf32>
    %c40 = arith.constant 40 : index
    %c0_2 = arith.constant 0 : index
    %2 = vector.load %arg2[%c40, %c0_2] : memref<41x128xf32, #tpu.memory_space<vmem>>, vector<1x128xf32>
    %c0_3 = arith.constant 0 : index
    %c0_4 = arith.constant 0 : index
    %3 = vector.load %arg0[%c0_3, %c0_4] : memref<16x16xf32, #tpu.memory_space<vmem>>, vector<16x16xf32>
    %c0_5 = arith.constant 0 : index
    %c0_6 = arith.constant 0 : index
    %4 = vector.load %arg1[%c0_5, %c0_6] : memref<16x8xf32, #tpu.memory_space<vmem>>, vector<16x8xf32>
    %cst = arith.constant dense<0.000000e+00> : vector<16x128xf32>
    %5 = tpu.matmul %4, %0, %cst {dimension_numbers = #tpu.dot_dimension_numbers<[1], [0], [0], [1], [0, 0, 1, 1], [], []>} : vector<16x8xf32>, vector<8x128xf32>, vector<16x128xf32> -> vector<16x128xf32>
    %6 = vector.extract_strided_slice %5 {offsets = [0, 0], sizes = [16, 64], strides = [1, 1]} : vector<16x128xf32> to vector<16x64xf32>
    %7 = vector.extract_strided_slice %5 {offsets = [0, 64], sizes = [16, 64], strides = [1, 1]} : vector<16x128xf32> to vector<16x64xf32>
    %cst_7 = arith.constant dense<0.000000e+00> : vector<16x64xf32>
    %8 = tpu.matmul %3, %7, %cst_7 {dimension_numbers = #tpu.dot_dimension_numbers<[1], [0], [0], [1], [0, 0, 1, 1], [], []>} : vector<16x16xf32>, vector<16x64xf32>, vector<16x64xf32> -> vector<16x64xf32>
    %9 = arith.addf %6, %8 : vector<16x64xf32>
    %10 = vector.extract_strided_slice %9 {offsets = [0, 0], sizes = [16, 32], strides = [1, 1]} : vector<16x64xf32> to vector<16x32xf32>
    %11 = arith.negf %10 : vector<16x32xf32>
    %12 = math.exp %11 : vector<16x32xf32>
    %cst_8 = arith.constant 1.000000e+00 : f32
    %13 = vector.broadcast %cst_8 : f32 to vector<16x32xf32>
    %14 = arith.addf %13, %12 : vector<16x32xf32>
    %15 = arith.divf %13, %14 : vector<16x32xf32>
    %16 = vector.extract_strided_slice %9 {offsets = [0, 32], sizes = [16, 32], strides = [1, 1]} : vector<16x64xf32> to vector<16x32xf32>
    %17 = math.tanh %16 : vector<16x32xf32>
    %cst_9 = arith.constant 1.000000e+00 : f32
    %18 = vector.broadcast %cst_9 : f32 to vector<16x32xf32>
    %19 = arith.subf %18, %15 : vector<16x32xf32>
    %20 = arith.mulf %19, %17 : vector<16x32xf32>
    %cst_10 = arith.constant 0.000000e+00 : f32
    %21 = vector.broadcast %cst_10 : f32 to vector<16x32xf32>
    %22 = arith.maximumf %20, %21 : vector<16x32xf32>
    %cst_11 = arith.constant dense<0.000000e+00> : vector<16x128xf32>
    %23 = tpu.matmul %22, %1, %cst_11 {dimension_numbers = #tpu.dot_dimension_numbers<[1], [0], [0], [1], [0, 0, 1, 1], [], []>} : vector<16x32xf32>, vector<32x128xf32>, vector<16x128xf32> -> vector<16x128xf32>
    %24 = vector.broadcast %2 : vector<1x128xf32> to vector<16x128xf32>
    %25 = arith.addf %23, %24 : vector<16x128xf32>
    %c0_12 = arith.constant 0 : index
    %c0_13 = arith.constant 0 : index
    %26 = vector.load %arg3[%c0_12, %c0_13] : memref<16x128xf32, #tpu.memory_space<vmem>>, vector<16x128xf32>
    tpu.vector_store %arg3[%c0_12, %c0_13], %25 {strides = array<i32>} : memref<16x128xf32, #tpu.memory_space<vmem>>, vector<16x128xf32>,
    return
  }
}

</mosaic_0001>

<llo_original>
// kernel: tpu_custom_call.1
$region0: #{tpu_custom_call.1}
  #allocation0 [shape = 'u32[]', space=smem, size = 0x4, offset = 0x4, fixed_abs, tag = 'smem constant byte address 0x4 - core index']
  #allocation1 [shape = 'u32[144,128]{1,0:T(1,128)}', space=vmem, size = 0x12000, scoped, tag = 'internal scratch']
  %s0 = inlined_call_operand.vmem [shape: f32[16,16], index: 0, kind: input, shape index: {}]
  %s1 = inlined_call_operand.vmem [shape: f32[16,8], index: 1, kind: input, shape index: {}]
  %s2 = inlined_call_operand.hbm [shape: f32[41,128], index: 2, kind: input, shape index: {}]
  %s3 = inlined_call_operand.hbm [shape: f32[16,128], index: 3, kind: output, shape index: {}]
  %s4 = sld [smem:[#allocation0]]
  $region26: #{tpu_custom_call.1} parent=0
    _
  %s6 = ssub.s32 1, %s4
  %s7 = scalar_select 0, %s6, %s4
  $region1: #{tpu_custom_call.1} parent=0
    #allocation2 [shape = 'u8[24576]{0}', space=vmem, size = 0x6000, scoped, tag = 'input window, operand 2, single buffered']
    #allocation3 [shape = 's32[1]{0}', space=sflag, size = 0x4, scoped, tag = 'scoped memory for tpu_custom_call.1']
    #allocation4 [shape = 's32[1]{0}', space=sflag, size = 0x4, scoped, tag = 'scoped memory for tpu_custom_call.1']
    #allocation5 [shape = 'u8[8192]{0}', space=vmem, size = 0x2000, scoped, tag = 'output window, operand 0, single buffered']
    %8 = vsyncpa [#allocation3], 0
    %9 = vsyncpa [#allocation4], 0
    // Predicated region
    $region2: #{tpu_custom_call.1} parent=1 // pred_check
      _
    $region3: #{tpu_custom_call.1} parent=1 // pred_check_branch
      %11 = sbr.rel (0) target = $region5
    $region4: #{tpu_custom_call.1} parent=1 // pred_region
      _
    $region5: #{tpu_custom_call.1} parent=1 // pred_fallthru
      _
    // Predicated region
    $region6: #{tpu_custom_call.1} parent=1 // pred_check
      _
    $region7: #{tpu_custom_call.1} parent=1 // pred_check_branch
      %13 = sbr.rel (0) target = $region9
    $region8: #{tpu_custom_call.1} parent=1 // pred_region
      _
    $region9: #{tpu_custom_call.1} parent=1 // pred_fallthru
      _
    // Predicated region
    $region10: #{tpu_custom_call.1} parent=1 // pred_check
      _
    $region11: #{tpu_custom_call.1} parent=1 // pred_check_branch
      %15 = sbr.rel (0) target = $region13
    $region12: #{tpu_custom_call.1} parent=1 // pred_region
      %s17 = ssub.s32 768, 768
      %18 = vsyncadd [#allocation3], %s17
      %s19 = sshll.u32 [#allocation2], 4
      %s20 = int_to_ptr.vmem [resolvable:$true] %s19
      %25 = dma.hbm_to_vmem [thread:$0]  %s2, 768, %s20, [#allocation3], 128, 128, 8
    $region13: #{tpu_custom_call.1} parent=1 // pred_fallthru
      _
    // Predicated region
    $region14: #{tpu_custom_call.1} parent=1 // pred_check
      _
    $region15: #{tpu_custom_call.1} parent=1 // pred_check_branch
      %27 = sbr.rel (0) target = $region17
    $region16: #{tpu_custom_call.1} parent=1 // pred_region
      %28 = dma.done [#allocation3], 768
    $region17: #{tpu_custom_call.1} parent=1 // pred_fallthru
      _
    %v29 = vld [vmem:[#allocation2] sm:$0xff]
    %v30 = vld [vmem:[#allocation2 + $0x8] sm:$0xff]
    %v31 = vld [vmem:[#allocation2 + $0x10] sm:$0xff]
    %v32 = vld [vmem:[#allocation2 + $0x18] sm:$0xff]
    %v33 = vld [vmem:[#allocation2 + $0x20] sm:$0xff]
    %v34 = vld [vmem:[#allocation2 + $0x28] sm:$0x1]
    %v35 = vld [vmem:[%s0] sm:$0xff]
    %v36 = vld [vmem:[%s0 + $0x8] sm:$0xff]
    %v37 = vld [vmem:[%s1] sm:$0xff]
    %v38 = vld [vmem:[%s1 + $0x8] sm:$0xff]
    %vm39 = vcmask 64512
    %v41 = vsel %vm39, %v37, 0
    %v44 = vsel %vm39, %v38, 0
    %46 = vmatprep.subr.mxu0 0.0
    %47 = vmatpush1.msra.mxu0 %v29
    %48 = vmatprep.subr.mxu0 0.0
    %49 = vmatpush1.msra.mxu0 0.0
    %50 = vmatprep.subr.mxu0 0.0
    %51 = vmatpush1.msra.mxu0 0.0
    %52 = vmatprep.subr.mxu0 0.0
    %53 = vmatpush1.msra.mxu0 0.0
    %54 = vmatprep.subr.mxu0 0.0
    %55 = vmatpush1.msra.mxu0 0.0
    %56 = vmatprep.subr.mxu0 0.0
    %57 = vmatpush1.msra.mxu0 0.0
    %58 = vmatprep.subr.mxu0 0.0
    %59 = vmatpush1.msra.mxu0 0.0
    %60 = vmatprep.subr.mxu0 0.0
    %61 = vmatpush1.msra.mxu0 0.0
    %62 = vmatprep.subr.mxu0 0.0
    %63 = vmatpush1.msra.mxu0 0.0
    %64 = vmatprep.subr.mxu0 0.0
    %65 = vmatpush1.msra.mxu0 0.0
    %66 = vmatprep.subr.mxu0 0.0
    %67 = vmatpush1.msra.mxu0 0.0
    %68 = vmatprep.subr.mxu0 0.0
    %69 = vmatpush1.msra.mxu0 0.0
    %70 = vmatprep.subr.mxu0 0.0
    %71 = vmatpush1.msra.mxu0 0.0
    %72 = vmatprep.subr.mxu0 0.0
    %73 = vmatpush1.msra.mxu0 0.0
    %74 = vmatprep.subr.mxu0 0.0
    %75 = vmatpush1.msra.mxu0 0.0
    %76 = vmatprep.subr.mxu0 0.0
    %77 = vmatpush1.msra.mxu0 0.0
    %78 = vmatprep.subr.mxu0 0.0
    %79 = vmatpush1.msra.mxu0 0.0
    %80 = vmatprep.subr.mxu0 0.0
    %81 = vmatpush1.msra.mxu0 0.0
    %82 = vmatprep.subr.mxu0 0.0
    %83 = vmatpush1.msra.mxu0 0.0
    %84 = vmatprep.subr.mxu0 0.0
    %85 = vmatpush1.msra.mxu0 0.0
    %86 = vmatprep.subr.mxu0 0.0
    %87 = vmatpush1.msra.mxu0 0.0
    %88 = vmatprep.subr.mxu0 0.0
    %89 = vmatpush1.msra.mxu0 0.0
    %90 = vmatprep.subr.mxu0 0.0
    %91 = vmatpush1.msra.mxu0 0.0
    %92 = vmatprep.subr.mxu0 0.0
    %93 = vmatpush1.msra.mxu0 0.0
    %94 = vmatprep.subr.mxu0 0.0
    %95 = vmatpush1.msra.mxu0 0.0
    %96 = vmatprep.subr.mxu0 0.0
    %97 = vmatpush1.msra.mxu0 0.0
    %98 = vmatprep.subr.mxu0 0.0
    %99 = vmatpush1.msra.mxu0 0.0
    %100 = vmatprep.subr.mxu0 0.0
    %101 = vmatpush1.msra.mxu0 0.0
    %102 = vmatprep.subr.mxu0 0.0
    %103 = vmatpush1.msra.mxu0 0.0
    %104 = vmatprep.subr.mxu0 0.0
    %105 = vmatpush1.msra.mxu0 0.0
    %106 = vmatprep.subr.mxu0 0.0
    %107 = vmatpush1.msra.mxu0 0.0
    %108 = vmatprep.subr.mxu0 0.0
    %109 = vmatpush1.msra.mxu0 0.0
    %110 = vmatprep.mubr.f32.mxu0 0.0
    %111 = vmatmul.mubr.f32.gmra.mrb[0].mxu0 %v41
    %v112 = vpop.f32.mrb[0].mxu0
    %v113 = vadd.f32 0.0, %v112
    %v114 = vpop.f32.mrb[0].mxu0
    %115 = vmatprep.mubr.f32.mxu0 0.0
    %116 = vmatmul.mubr.f32.gmra.mrb[0].mxu0 %v44
    %v117 = vpop.f32.mrb[0].mxu0
    %v118 = vadd.f32 0.0, %v117
    %v119 = vpop.f32.mrb[0].mxu0
    %120 = vdwg.mxu0
    %123 = vrot.lane.b32.xlu0 %v113, 64
    %v124 = vpop.permute.xlu0 %123
    %125 = vrot.lane.b32.xlu0 %v118, 64
    %v126 = vpop.permute.xlu0 %125
    %vm129 = vcmask 130048
    %v131 = vsel %vm129, %v35, 0
    %v134 = vsel %vm129, %v36, 0
    %136 = vmatprep.subr.mxu0 0.0
    %137 = vmatpush1.msra.mxu0 %v124
    %138 = vmatprep.subr.mxu0 0.0
    %139 = vmatpush1.msra.mxu0 %v126
    %140 = vmatprep.subr.mxu0 0.0
    %141 = vmatpush1.msra.mxu0 0.0
    %142 = vmatprep.subr.mxu0 0.0
    %143 = vmatpush1.msra.mxu0 0.0
    %144 = vmatprep.subr.mxu0 0.0
    %145 = vmatpush1.msra.mxu0 0.0
    %146 = vmatprep.subr.mxu0 0.0
    %147 = vmatpush1.msra.mxu0 0.0
    %148 = vmatprep.subr.mxu0 0.0
    %149 = vmatpush1.msra.mxu0 0.0
    %150 = vmatprep.subr.mxu0 0.0
    %151 = vmatpush1.msra.mxu0 0.0
    %152 = vmatprep.subr.mxu0 0.0
    %153 = vmatpush1.msra.mxu0 0.0
    %154 = vmatprep.subr.mxu0 0.0
    %155 = vmatpush1.msra.mxu0 0.0
    %156 = vmatprep.subr.mxu0 0.0
    %157 = vmatpush1.msra.mxu0 0.0
    %158 = vmatprep.subr.mxu0 0.0
    %159 = vmatpush1.msra.mxu0 0.0
    %160 = vmatprep.subr.mxu0 0.0
    %161 = vmatpush1.msra.mxu0 0.0
    %162 = vmatprep.subr.mxu0 0.0
    %163 = vmatpush1.msra.mxu0 0.0
    %164 = vmatprep.subr.mxu0 0.0
    %165 = vmatpush1.msra.mxu0 0.0
    %166 = vmatprep.subr.mxu0 0.0
    %167 = vmatpush1.msra.mxu0 0.0
    %168 = vmatprep.subr.mxu0 0.0
    %169 = vmatpush1.msra.mxu0 0.0
    %170 = vmatprep.subr.mxu0 0.0
    %171 = vmatpush1.msra.mxu0 0.0
    %172 = vmatprep.subr.mxu0 0.0
    %173 = vmatpush1.msra.mxu0 0.0
    %174 = vmatprep.subr.mxu0 0.0
    %175 = vmatpush1.msra.mxu0 0.0
    %176 = vmatprep.subr.mxu0 0.0
    %177 = vmatpush1.msra.mxu0 0.0
    %178 = vmatprep.subr.mxu0 0.0
    %179 = vmatpush1.msra.mxu0 0.0
    %180 = vmatprep.subr.mxu0 0.0
    %181 = vmatpush1.msra.mxu0 0.0
    %182 = vmatprep.subr.mxu0 0.0
    %183 = vmatpush1.msra.mxu0 0.0
    %184 = vmatprep.subr.mxu0 0.0
    %185 = vmatpush1.msra.mxu0 0.0
    %186 = vmatprep.subr.mxu0 0.0
    %187 = vmatpush1.msra.mxu0 0.0
    %188 = vmatprep.subr.mxu0 0.0
    %189 = vmatpush1.msra.mxu0 0.0
    %190 = vmatprep.subr.mxu0 0.0
    %191 = vmatpush1.msra.mxu0 0.0
    %192 = vmatprep.subr.mxu0 0.0
    %193 = vmatpush1.msra.mxu0 0.0
    %194 = vmatprep.subr.mxu0 0.0
    %195 = vmatpush1.msra.mxu0 0.0
    %196 = vmatprep.subr.mxu0 0.0
    %197 = vmatpush1.msra.mxu0 0.0
    %198 = vmatprep.subr.mxu0 0.0
    %199 = vmatpush1.msra.mxu0 0.0
    %200 = vmatprep.mubr.f32.mxu0 0.0
    %201 = vmatmul.mubr.f32.gmra.mrb[0].mxu0 %v131
    %v202 = vpop.f32.mrb[0].mxu0
    %v203 = vadd.f32 0.0, %v202
    %v204 = vpop.f32.mrb[0].mxu0
    %205 = vmatprep.mubr.f32.mxu0 0.0
    %206 = vmatmul.mubr.f32.gmra.mrb[0].mxu0 %v134
    %v207 = vpop.f32.mrb[0].mxu0
    %v208 = vadd.f32 0.0, %v207
    %v209 = vpop.f32.mrb[0].mxu0
    %210 = vdwg.mxu0
    %v211 = vadd.f32 %v113, %v203
    %v212 = vadd.f32 %v118, %v208
    %v213 = vxor.u32 %v211, 2147483648
    %v214 = vxor.u32 %v212, 2147483648
    %v215 = vmul.f32 %v213, 1.442695
    %v216 = vpow.pop %v215
    %v217 = vmul.f32 %v214, 1.442695
    %v218 = vpow.pop %v217
    %v219 = vadd.f32 %v216, 1.0
    %v220 = vadd.f32 %v218, 1.0
    %v221 = vrcp.pop %v219
    %v222 = vmul.f32 1.0, %v221
    %v223 = vrcp.pop %v220
    %v224 = vmul.f32 1.0, %v223
    %v225 = vtanh.pop %v211
    %v226 = vtanh.pop %v212
    %v227 = vsub.f32 1.0, %v222
    %v228 = vsub.f32 1.0, %v224
    %231 = vrot.lane.b32.xlu0 %v225, 96
    %v232 = vpop.permute.xlu0 %231
    %233 = vrot.lane.b32.xlu0 %v226, 96
    %v234 = vpop.permute.xlu0 %233
    %v237 = vmul.f32 %v227, %v232
    %v238 = vmul.f32 %v228, %v234
    %v239 = vmax.f32 %v237, 0.0
    %v240 = vmax.f32 %v238, 0.0
    %v241 = vlaneseq
    %v242 = vshrl.u32 %v241, 7
    %v243 = vsub.s32 0, %v242
    %v244 = vrot.slane %v34, %v243
    %vm245 = vcmask 261120
    %v247 = vsel %vm245, %v239, 0
    %v250 = vsel %vm245, %v240, 0
    %252 = vmatprep.subr.mxu0 0.0
    %253 = vmatpush1.msra.mxu0 %v30
    %254 = vmatprep.subr.mxu0 0.0
    %255 = vmatpush1.msra.mxu0 %v31
    %256 = vmatprep.subr.mxu0 0.0
    %257 = vmatpush1.msra.mxu0 %v32
    %258 = vmatprep.subr.mxu0 0.0
    %259 = vmatpush1.msra.mxu0 %v33
    %260 = vmatprep.subr.mxu0 0.0
    %261 = vmatpush1.msra.mxu0 0.0
    %262 = vmatprep.subr.mxu0 0.0
    %263 = vmatpush1.msra.mxu0 0.0
    %264 = vmatprep.subr.mxu0 0.0
    %265 = vmatpush1.msra.mxu0 0.0
    %266 = vmatprep.subr.mxu0 0.0
    %267 = vmatpush1.msra.mxu0 0.0
    %268 = vmatprep.subr.mxu0 0.0
    %269 = vmatpush1.msra.mxu0 0.0
    %270 = vmatprep.subr.mxu0 0.0
    %271 = vmatpush1.msra.mxu0 0.0
    %272 = vmatprep.subr.mxu0 0.0
    %273 = vmatpush1.msra.mxu0 0.0
    %274 = vmatprep.subr.mxu0 0.0
    %275 = vmatpush1.msra.mxu0 0.0
    %276 = vmatprep.subr.mxu0 0.0
    %277 = vmatpush1.msra.mxu0 0.0
    %278 = vmatprep.subr.mxu0 0.0
    %279 = vmatpush1.msra.mxu0 0.0
    %280 = vmatprep.subr.mxu0 0.0
    %281 = vmatpush1.msra.mxu0 0.0
    %282 = vmatprep.subr.mxu0 0.0
    %283 = vmatpush1.msra.mxu0 0.0
    %284 = vmatprep.subr.mxu0 0.0
    %285 = vmatpush1.msra.mxu0 0.0
    %286 = vmatprep.subr.mxu0 0.0
    %287 = vmatpush1.msra.mxu0 0.0
    %288 = vmatprep.subr.mxu0 0.0
    %289 = vmatpush1.msra.mxu0 0.0
    %290 = vmatprep.subr.mxu0 0.0
    %291 = vmatpush1.msra.mxu0 0.0
    %292 = vmatprep.subr.mxu0 0.0
    %293 = vmatpush1.msra.mxu0 0.0
    %294 = vmatprep.subr.mxu0 0.0
    %295 = vmatpush1.msra.mxu0 0.0
    %296 = vmatprep.subr.mxu0 0.0
    %297 = vmatpush1.msra.mxu0 0.0
    %298 = vmatprep.subr.mxu0 0.0
    %299 = vmatpush1.msra.mxu0 0.0
    %300 = vmatprep.subr.mxu0 0.0
    %301 = vmatpush1.msra.mxu0 0.0
    %302 = vmatprep.subr.mxu0 0.0
    %303 = vmatpush1.msra.mxu0 0.0
    %304 = vmatprep.subr.mxu0 0.0
    %305 = vmatpush1.msra.mxu0 0.0
    %306 = vmatprep.subr.mxu0 0.0
    %307 = vmatpush1.msra.mxu0 0.0
    %308 = vmatprep.subr.mxu0 0.0
    %309 = vmatpush1.msra.mxu0 0.0
    %310 = vmatprep.subr.mxu0 0.0
    %311 = vmatpush1.msra.mxu0 0.0
    %312 = vmatprep.subr.mxu0 0.0
    %313 = vmatpush1.msra.mxu0 0.0
    %314 = vmatprep.subr.mxu0 0.0
    %315 = vmatpush1.msra.mxu0 0.0
    %316 = vmatprep.mubr.f32.mxu0 0.0
    %317 = vmatmul.mubr.f32.gmra.mrb[0].mxu0 %v247
    %v318 = vpop.f32.mrb[0].mxu0
    %v319 = vadd.f32 %v244, %v318
    %v320 = vpop.f32.mrb[0].mxu0
    %321 = vmatprep.mubr.f32.mxu0 0.0
    %322 = vmatmul.mubr.f32.gmra.mrb[0].mxu0 %v250
    %v323 = vpop.f32.mrb[0].mxu0
    %v324 = vadd.f32 %v244, %v323
    %v325 = vpop.f32.mrb[0].mxu0
    %326 = vdwg.mxu0
    %327 = vst [vmem:[#allocation5] sm:$0xff] %v319
    %328 = vst [vmem:[#allocation5 + $0x8] sm:$0xff] %v324
    // Predicated region
    $region18: #{tpu_custom_call.1} parent=1 // pred_check
      _
    $region19: #{tpu_custom_call.1} parent=1 // pred_check_branch
      %330 = sbr.rel (0) target = $region21
    $region20: #{tpu_custom_call.1} parent=1 // pred_region
      %s332 = ssub.s32 256, 256
      %333 = vsyncadd [#allocation4], %s332
      %s334 = sshll.u32 [#allocation5], 4
      %s335 = int_to_ptr.vmem [resolvable:$true] %s334
      %340 = dma.vmem_to_hbm [thread:$0]  %s335, 256, %s3, [#allocation4], 128, 128, 8
    $region21: #{tpu_custom_call.1} parent=1 // pred_fallthru
      _
    // Predicated region
    $region22: #{tpu_custom_call.1} parent=1 // pred_check
      _
    $region23: #{tpu_custom_call.1} parent=1 // pred_check_branch
      %342 = sbr.rel (0) target = $region25
    $region24: #{tpu_custom_call.1} parent=1 // pred_region
      %343 = dma.done [#allocation4], 256
    $region25: #{tpu_custom_call.1} parent=1 // pred_fallthru
      _
    %344 = vsyncpa [#allocation3], 1
    %345 = vsyncpa [#allocation4], 1

</llo_original>
